<compile_context>
chip_gen: v7x
topology: tpu7x:2x2x1
jax: 0.10.0
libtpu: 0.0.40
codegen_flags: <defaults>
</compile_context>

<pallas_src>
import functools

import jax
import jax.numpy as jnp
from jax import lax
from jax.experimental import pallas as pl
from jax.experimental.pallas import tpu as pltpu


VMEM_SPEC = pl.BlockSpec(memory_space=pltpu.MemorySpace.VMEM)
LANES = 128  # lane-dense loss slab width


# ----------------------------------------------------------------------------
# Kernel 1 (fused over views via grid): z_i = proj(PReLU(adj_i @ (feat @ Wg_i) + bg_i))
# ----------------------------------------------------------------------------
def embed_kernel(adj_ref, wg_ref, bg_ref, feat_ref, w1_ref, b1_ref, w2_ref, b2_ref,
                 out_ref, *, prelu_a):
    # GCN_one: linear -> propagate -> bias -> PReLU   (bf16 MXU inputs, f32 accumulate)
    xw = jnp.dot(feat_ref[...], wg_ref[...], preferred_element_type=jnp.float32)
    h = jnp.dot(adj_ref[...], xw.astype(jnp.bfloat16),
                preferred_element_type=jnp.float32)
    h = h + bg_ref[...]
    h = jnp.where(h > 0, h, prelu_a * h)                        # PReLU (a = 0.25)

    # proj: Linear -> ELU -> Linear
    z = jnp.dot(h.astype(jnp.bfloat16), w1_ref[...],
                preferred_element_type=jnp.float32) + b1_ref[...]
    # ELU(alpha=1); clamp the unselected positive branch so exp never overflows.
    z = jnp.where(z > 0, z, jnp.exp(jnp.minimum(z, 0.0)) - 1.0)
    z = jnp.dot(z.astype(jnp.bfloat16), w2_ref[...],
                preferred_element_type=jnp.float32) + b2_ref[...]

    out_ref[...] = z


def embed_all(adj_stack, feat, wg_stack, bg_stack, w1, b1, w2, b2, *, prelu_a=0.25):
    """adj_stack: (V,N,N), feat: (N,F), wg_stack: (V,F,H), bg_stack: (V,1,H)."""
    nv, n, _ = adj_stack.shape
    f = feat.shape[1]
    h = wg_stack.shape[2]

    # Cast matmul operands to bf16 once at the boundary (f32 accumulation in-kernel).
    adj_bf = adj_stack.astype(jnp.bfloat16)
    feat_bf = feat.astype(jnp.bfloat16)
    wg_bf = wg_stack.astype(jnp.bfloat16)
    w1_bf = w1.astype(jnp.bfloat16)
    w2_bf = w2.astype(jnp.bfloat16)

    return pl.pallas_call(
        functools.partial(embed_kernel, prelu_a=prelu_a),
        out_shape=jax.ShapeDtypeStruct((nv, n, h), jnp.float32),
        grid_spec=pltpu.PrefetchScalarGridSpec(
            num_scalar_prefetch=0,
            grid=(nv,),
            in_specs=[
                pl.BlockSpec((None, n, n), lambda i: (i, 0, 0)),   # adj  (per view)
                pl.BlockSpec((None, f, h), lambda i: (i, 0, 0)),   # Wg   (per view)
                pl.BlockSpec((None, 1, h), lambda i: (i, 0, 0)),   # bg   (per view)
                pl.BlockSpec((n, f), lambda i: (0, 0)),            # feat (shared)
                pl.BlockSpec((h, h), lambda i: (0, 0)),            # W1   (shared)
                pl.BlockSpec((1, h), lambda i: (0, 0)),            # b1   (shared)
                pl.BlockSpec((h, h), lambda i: (0, 0)),            # W2   (shared)
                pl.BlockSpec((1, h), lambda i: (0, 0)),            # b2   (shared)
            ],
            out_specs=pl.BlockSpec((None, n, h), lambda i: (i, 0, 0)),
        ),
        compiler_params=pltpu.CompilerParams(
            dimension_semantics=("parallel",)),
    )(adj_bf, wg_bf, bg_stack, feat_bf, w1_bf, b1, w2_bf, b2)


# ----------------------------------------------------------------------------
# Kernel 2 (fused): all three InfoNCE terms from the stacked embeddings (3,N,H)
# ----------------------------------------------------------------------------
def nce_fused_kernel(z_ref, loss_ref, *, inv_tau, n_inv):
    # Row-normalize each embedding exactly once (rsqrt -> EUP slot).
    def normalize(z):
        return z * lax.rsqrt(jnp.sum(z * z, axis=-1, keepdims=True) + 1e-12)

    z0 = normalize(z_ref[0])
    z1 = normalize(z_ref[1])
    z2 = normalize(z_ref[2])

    def pair_loss(a, b):
        # cosine similarity (rows already unit-norm); contract last dims directly
        # so the MXU consumes both operands untransposed (no XLU transpose of b).
        sim = lax.dot_general(a, b, (((1,), (1,)), ((), ())),
                              preferred_element_type=jnp.float32)      # (N, N)
        e = jnp.exp(sim * inv_tau)
        row_sum = jnp.sum(e, axis=1, keepdims=True)                    # (N, 1)
        inv_row = pl.reciprocal(row_sum + 1e-8, approx=True)           # EUP
        # Diagonal of S computed directly: O(N*H), no (N,N) masks.
        diag_cos = jnp.sum(a * b, axis=-1, keepdims=True)              # (N, 1)
        diag_s = jnp.exp(diag_cos * inv_tau) * inv_row
        # -mean(log(diag(S) + 1e-8))   as a (1,1) value
        return -jnp.sum(jnp.log(diag_s + 1e-8), axis=0, keepdims=True) * n_inv

    l01 = pair_loss(z0, z1)   # vv1
    l02 = pair_loss(z0, z2)   # vv2
    l12 = pair_loss(z1, z2)   # v1v2

    # Lane-dense loss slab: one row per pair, value broadcast across 128 lanes.
    loss_ref[0:1, :] = jnp.broadcast_to(l01, (1, LANES))
    loss_ref[1:2, :] = jnp.broadcast_to(l02, (1, LANES))
    loss_ref[2:3, :] = jnp.broadcast_to(l12, (1, LANES))


def nce_all(z_all, *, tau):
    n = z_all.shape[1]
    losses = pl.pallas_call(
        functools.partial(nce_fused_kernel, inv_tau=1.0 / tau, n_inv=1.0 / n),
        out_shape=jax.ShapeDtypeStruct((3, LANES), jnp.float32),
        in_specs=[VMEM_SPEC],
        out_specs=VMEM_SPEC,
    )(z_all)
    return losses[0, 0], losses[1, 0], losses[2, 0]


# ----------------------------------------------------------------------------
# MI_NCE forward (big=False path; glue in plain JAX, hot paths in Pallas)
# ----------------------------------------------------------------------------
def mi_nce_forward(adj_stack, feat, params, *, tau):
    z_all = embed_all(adj_stack, feat,
                      params["wg"], params["bg"],
                      *params["proj"], prelu_a=params["prelu_a"])
    vv1, vv2, v1v2 = nce_all(z_all, tau=tau)
    return vv1, vv2, v1v2


def make_params(key, num_feature, mi_hid):
    ks = jax.random.split(key, 8)

    def lin(k, din, dout, scale=0.1):
        return jax.random.normal(k, (din, dout), jnp.float32) * scale

    params = {
        # Stacked per-view GCN weights/biases: (3, F, H) / (3, 1, H)
        "wg": jnp.stack([lin(ks[0], num_feature, mi_hid),
                         lin(ks[1], num_feature, mi_hid),
                         lin(ks[2], num_feature, mi_hid)], axis=0),
        "bg": jnp.zeros((3, 1, mi_hid), jnp.float32),
        # Shared projection MLP
        "proj": (lin(ks[3], mi_hid, mi_hid),
                 jax.random.normal(ks[4], (1, mi_hid), jnp.float32) * 0.05,
                 lin(ks[5], mi_hid, mi_hid),
                 jax.random.normal(ks[6], (1, mi_hid), jnp.float32) * 0.05),
        "prelu_a": 0.25,   # nn.PReLU() default init
    }
    return params


def make_view(key, n):
    a = jax.random.uniform(key, (n, n), jnp.float32)
    a = (a + a.T) * 0.5 + jnp.eye(n, dtype=jnp.float32)        # symmetric + self loops
    a = a / jnp.sum(a, axis=1, keepdims=True)                   # row-normalize
    return a


if __name__ == "__main__":
    # Lane-dense small shapes: nodes, num_feature, mi_hid_1 all multiples of 128.
    N, F, H = 128, 128, 128
    TAU = 0.5

    key = jax.random.PRNGKey(0)
    k_feat, k_v0, k_v1, k_v2, k_par = jax.random.split(key, 5)

    feat = jax.random.normal(k_feat, (N, F), jnp.float32)
    adj_stack = jnp.stack([make_view(k_v0, N), make_view(k_v1, N), make_view(k_v2, N)],
                          axis=0)                                # (3, N, N)
    params = make_params(k_par, F, H)

    vv1, vv2, v1v2 = mi_nce_forward(adj_stack, feat, params, tau=TAU)
    jax.block_until_ready((vv1, vv2, v1v2))

    assert bool(jnp.isfinite(vv1)) and bool(jnp.isfinite(vv2)) and bool(jnp.isfinite(v1v2))
    print("KERNEL_OK")
</pallas_src>

<mosaic_0001>
module attributes {stable_mosaic.version = 11 : i64} {
  func.func @embed_kernel(%arg0: i32, %arg1: memref<1x128x128xbf16, #tpu.memory_space<vmem>>, %arg2: memref<1x128x128xbf16, #tpu.memory_space<vmem>>, %arg3: memref<1x1x128xf32, #tpu.memory_space<vmem>>, %arg4: memref<128x128xbf16, #tpu.memory_space<vmem>>, %arg5: memref<128x128xbf16, #tpu.memory_space<vmem>>, %arg6: memref<1x128xf32, #tpu.memory_space<vmem>>, %arg7: memref<128x128xbf16, #tpu.memory_space<vmem>>, %arg8: memref<1x128xf32, #tpu.memory_space<vmem>>, %arg9: memref<1x128x128xf32, #tpu.memory_space<vmem>>) attributes {dimension_semantics = [#tpu.dimension_semantics<parallel>], iteration_bounds = array<i64: 3>, scalar_prefetch = 0 : i64, scratch_operands = 0 : i64, tpu.core_type = #tpu.core_type<tc>, window_params = [{transform_indices = @transform_0, window_bounds = array<i64: 1, 128, 128>}, {transform_indices = @transform_1, window_bounds = array<i64: 1, 128, 128>}, {transform_indices = @transform_2, window_bounds = array<i64: 1, 1, 128>}, {pipeline_mode = #tpu.pipeline_mode<synchronous>, transform_indices = @transform_3, window_bounds = array<i64: 128, 128>}, {pipeline_mode = #tpu.pipeline_mode<synchronous>, transform_indices = @transform_4, window_bounds = array<i64: 128, 128>}, {pipeline_mode = #tpu.pipeline_mode<synchronous>, transform_indices = @transform_5, window_bounds = array<i64: 1, 128>}, {pipeline_mode = #tpu.pipeline_mode<synchronous>, transform_indices = @transform_6, window_bounds = array<i64: 128, 128>}, {pipeline_mode = #tpu.pipeline_mode<synchronous>, transform_indices = @transform_7, window_bounds = array<i64: 1, 128>}, {transform_indices = @transform_8, window_bounds = array<i64: 1, 128, 128>}]} {
    %c0 = arith.constant 0 : index
    %c0_0 = arith.constant 0 : index
    %0 = vector.load %arg4[%c0, %c0_0] : memref<128x128xbf16, #tpu.memory_space<vmem>>, vector<128x128xbf16>
    %c0_1 = arith.constant 0 : index
    %c0_2 = arith.constant 0 : index
    %c0_3 = arith.constant 0 : index
    %1 = vector.load %arg2[%c0_1, %c0_2, %c0_3] : memref<1x128x128xbf16, #tpu.memory_space<vmem>>, vector<1x128x128xbf16>
    %2 = vector.shape_cast %1 : vector<1x128x128xbf16> to vector<128x128xbf16>
    %cst = arith.constant dense<0.000000e+00> : vector<128x128xf32>
    %3 = tpu.matmul %0, %2, %cst {dimension_numbers = #tpu.dot_dimension_numbers<[1], [0], [0], [1], [0, 0, 1, 1], [], []>} : vector<128x128xbf16>, vector<128x128xbf16>, vector<128x128xf32> -> vector<128x128xf32>
    %c0_4 = arith.constant 0 : index
    %c0_5 = arith.constant 0 : index
    %c0_6 = arith.constant 0 : index
    %4 = vector.load %arg1[%c0_4, %c0_5, %c0_6] : memref<1x128x128xbf16, #tpu.memory_space<vmem>>, vector<1x128x128xbf16>
    %5 = vector.shape_cast %4 : vector<1x128x128xbf16> to vector<128x128xbf16>
    %6 = arith.truncf %3 : vector<128x128xf32> to vector<128x128xbf16>
    %cst_7 = arith.constant dense<0.000000e+00> : vector<128x128xf32>
    %7 = tpu.matmul %5, %6, %cst_7 {dimension_numbers = #tpu.dot_dimension_numbers<[1], [0], [0], [1], [0, 0, 1, 1], [], []>} : vector<128x128xbf16>, vector<128x128xbf16>, vector<128x128xf32> -> vector<128x128xf32>
    %c0_8 = arith.constant 0 : index
    %c0_9 = arith.constant 0 : index
    %c0_10 = arith.constant 0 : index
    %8 = vector.load %arg3[%c0_8, %c0_9, %c0_10] : memref<1x1x128xf32, #tpu.memory_space<vmem>>, vector<1x1x128xf32>
    %9 = vector.shape_cast %8 : vector<1x1x128xf32> to vector<1x128xf32>
    %10 = vector.broadcast %9 : vector<1x128xf32> to vector<128x128xf32>
    %11 = arith.addf %7, %10 : vector<128x128xf32>
    %cst_11 = arith.constant 0.000000e+00 : f32
    %12 = vector.broadcast %cst_11 : f32 to vector<128x128xf32>
    %13 = arith.cmpf ogt, %11, %12 : vector<128x128xf32>
    %cst_12 = arith.constant 2.500000e-01 : f32
    %14 = vector.broadcast %cst_12 : f32 to vector<128x128xf32>
    %15 = arith.mulf %14, %11 : vector<128x128xf32>
    %16 = arith.select %13, %11, %15 : vector<128x128xi1>, vector<128x128xf32>
    %17 = arith.truncf %16 : vector<128x128xf32> to vector<128x128xbf16>
    %c0_13 = arith.constant 0 : index
    %c0_14 = arith.constant 0 : index
    %18 = vector.load %arg5[%c0_13, %c0_14] : memref<128x128xbf16, #tpu.memory_space<vmem>>, vector<128x128xbf16>
    %cst_15 = arith.constant dense<0.000000e+00> : vector<128x128xf32>
    %19 = tpu.matmul %17, %18, %cst_15 {dimension_numbers = #tpu.dot_dimension_numbers<[1], [0], [0], [1], [0, 0, 1, 1], [], []>} : vector<128x128xbf16>, vector<128x128xbf16>, vector<128x128xf32> -> vector<128x128xf32>
    %c0_16 = arith.constant 0 : index
    %c0_17 = arith.constant 0 : index
    %20 = vector.load %arg6[%c0_16, %c0_17] : memref<1x128xf32, #tpu.memory_space<vmem>>, vector<1x128xf32>
    %21 = vector.broadcast %20 : vector<1x128xf32> to vector<128x128xf32>
    %22 = arith.addf %19, %21 : vector<128x128xf32>
    %cst_18 = arith.constant 0.000000e+00 : f32
    %23 = vector.broadcast %cst_18 : f32 to vector<128x128xf32>
    %24 = arith.cmpf ogt, %22, %23 : vector<128x128xf32>
    %cst_19 = arith.constant 0.000000e+00 : f32
    %25 = vector.broadcast %cst_19 : f32 to vector<128x128xf32>
    %26 = arith.minimumf %22, %25 : vector<128x128xf32>
    %27 = math.exp %26 : vector<128x128xf32>
    %cst_20 = arith.constant 1.000000e+00 : f32
    %28 = vector.broadcast %cst_20 : f32 to vector<128x128xf32>
    %29 = arith.subf %27, %28 : vector<128x128xf32>
    %30 = arith.select %24, %22, %29 : vector<128x128xi1>, vector<128x128xf32>
    %31 = arith.truncf %30 : vector<128x128xf32> to vector<128x128xbf16>
    %c0_21 = arith.constant 0 : index
    %c0_22 = arith.constant 0 : index
    %32 = vector.load %arg7[%c0_21, %c0_22] : memref<128x128xbf16, #tpu.memory_space<vmem>>, vector<128x128xbf16>
    %cst_23 = arith.constant dense<0.000000e+00> : vector<128x128xf32>
    %33 = tpu.matmul %31, %32, %cst_23 {dimension_numbers = #tpu.dot_dimension_numbers<[1], [0], [0], [1], [0, 0, 1, 1], [], []>} : vector<128x128xbf16>, vector<128x128xbf16>, vector<128x128xf32> -> vector<128x128xf32>
    %c0_24 = arith.constant 0 : index
    %c0_25 = arith.constant 0 : index
    %34 = vector.load %arg8[%c0_24, %c0_25] : memref<1x128xf32, #tpu.memory_space<vmem>>, vector<1x128xf32>
    %35 = vector.broadcast %34 : vector<1x128xf32> to vector<128x128xf32>
    %36 = arith.addf %33, %35 : vector<128x128xf32>
    %c0_26 = arith.constant 0 : index
    %c0_27 = arith.constant 0 : index
    %c0_28 = arith.constant 0 : index
    %37 = vector.load %arg9[%c0_26, %c0_27, %c0_28] : memref<1x128x128xf32, #tpu.memory_space<vmem>>, vector<1x128x128xf32>
    %38 = vector.shape_cast %37 : vector<1x128x128xf32> to vector<128x128xf32>
    %39 = vector.shape_cast %36 : vector<128x128xf32> to vector<1x128x128xf32>
    tpu.vector_store %arg9[%c0_26, %c0_27, %c0_28], %39 {strides = array<i32>} : memref<1x128x128xf32, #tpu.memory_space<vmem>>, vector<1x128x128xf32>,
    return
  }
  func.func @transform_0(%arg0: i32) -> (i32, i32, i32) {
    %c0_i32 = arith.constant 0 : i32
    %c0_i32_0 = arith.constant 0 : i32
    %c0_i32_1 = arith.constant 0 : i32
    return %arg0, %c0_i32, %c0_i32_0 : i32, i32, i32
  }
  func.func @transform_1(%arg0: i32) -> (i32, i32, i32) {
    %c0_i32 = arith.constant 0 : i32
    %c0_i32_0 = arith.constant 0 : i32
    %c0_i32_1 = arith.constant 0 : i32
    return %arg0, %c0_i32, %c0_i32_0 : i32, i32, i32
  }
  func.func @transform_2(%arg0: i32) -> (i32, i32, i32) {
    %c0_i32 = arith.constant 0 : i32
    %c0_i32_0 = arith.constant 0 : i32
    %c0_i32_1 = arith.constant 0 : i32
    return %arg0, %c0_i32, %c0_i32_0 : i32, i32, i32
  }
  func.func @transform_3(%arg0: i32) -> (i32, i32) {
    %c0_i32 = arith.constant 0 : i32
    %c0_i32_0 = arith.constant 0 : i32
    %c0_i32_1 = arith.constant 0 : i32
    return %c0_i32, %c0_i32_0 : i32, i32
  }
  func.func @transform_4(%arg0: i32) -> (i32, i32) {
    %c0_i32 = arith.constant 0 : i32
    %c0_i32_0 = arith.constant 0 : i32
    %c0_i32_1 = arith.constant 0 : i32
    return %c0_i32, %c0_i32_0 : i32, i32
  }
  func.func @transform_5(%arg0: i32) -> (i32, i32) {
    %c0_i32 = arith.constant 0 : i32
    %c0_i32_0 = arith.constant 0 : i32
    %c0_i32_1 = arith.constant 0 : i32
    return %c0_i32, %c0_i32_0 : i32, i32
  }
  func.func @transform_6(%arg0: i32) -> (i32, i32) {
    %c0_i32 = arith.constant 0 : i32
    %c0_i32_0 = arith.constant 0 : i32
    %c0_i32_1 = arith.constant 0 : i32
    return %c0_i32, %c0_i32_0 : i32, i32
  }
  func.func @transform_7(%arg0: i32) -> (i32, i32) {
    %c0_i32 = arith.constant 0 : i32
    %c0_i32_0 = arith.constant 0 : i32
    %c0_i32_1 = arith.constant 0 : i32
    return %c0_i32, %c0_i32_0 : i32, i32
  }
  func.func @transform_8(%arg0: i32) -> (i32, i32, i32) {
    %c0_i32 = arith.constant 0 : i32
    %c0_i32_0 = arith.constant 0 : i32
    %c0_i32_1 = arith.constant 0 : i32
    return %arg0, %c0_i32, %c0_i32_0 : i32, i32, i32
  }
}

</mosaic_0001>

<llo_original>
// kernel: tpu_custom_call.1
$region0: #{tpu_custom_call.1}
  #allocation0 [shape = 'u32[]', space=smem, size = 0x4, offset = 0x4, fixed_abs, tag = 'smem constant byte address 0x4 - core index']
  #allocation1 [shape = 'u32[144,128]{1,0:T(1,128)}', space=vmem, size = 0x12000, scoped, tag = 'internal scratch']
  %s0 = inlined_call_operand.hbm [shape: bf16[3,128,128], index: 0, kind: input, shape index: {}]
  %s1 = inlined_call_operand.hbm [shape: bf16[3,128,128], index: 1, kind: input, shape index: {}]
  %s2 = inlined_call_operand.vmem [shape: f32[3,1,128], index: 2, kind: input, shape index: {}]
  %s3 = inlined_call_operand.hbm [shape: bf16[128,128], index: 3, kind: input, shape index: {}]
  %s4 = inlined_call_operand.hbm [shape: bf16[128,128], index: 4, kind: input, shape index: {}]
  %s5 = inlined_call_operand.vmem [shape: f32[1,128], index: 5, kind: input, shape index: {}]
  %s6 = inlined_call_operand.hbm [shape: bf16[128,128], index: 6, kind: input, shape index: {}]
  %s7 = inlined_call_operand.vmem [shape: f32[1,128], index: 7, kind: input, shape index: {}]
  %s8 = inlined_call_operand.hbm [shape: f32[3,128,128], index: 8, kind: output, shape index: {}]
  %s9 = sld [smem:[#allocation0]]
  $region85: #{tpu_custom_call.1} parent=0
    _
  %s11 = ssub.s32 1, %s9
  %s12 = scalar_select 0, %s11, %s9
  $region1: #{tpu_custom_call.1} parent=0
    #allocation2 [shape = 'u8[65536]{0}', space=vmem, size = 0x10000, scoped, tag = 'input window, operand 0']
    #allocation3 [shape = 's32[2]{0}', space=sflag, size = 0x8, scoped, tag = 'scoped memory for tpu_custom_call.1']
    #allocation4 [shape = 's32[2]{0}', space=sflag, size = 0x8, scoped, tag = 'scoped memory for tpu_custom_call.1']
    #allocation5 [shape = 'u8[65536]{0}', space=vmem, size = 0x10000, scoped, tag = 'input window, operand 1']
    #allocation6 [shape = 's32[2]{0}', space=sflag, size = 0x8, scoped, tag = 'scoped memory for tpu_custom_call.1']
    #allocation7 [shape = 'u8[32768]{0}', space=vmem, size = 0x8000, scoped, tag = 'input window, operand 3, single buffered']
    #allocation8 [shape = 'u8[32768]{0}', space=vmem, size = 0x8000, scoped, tag = 'input window, operand 4, single buffered']
    #allocation9 [shape = 's32[1]{0}', space=sflag, size = 0x4, scoped, tag = 'scoped memory for tpu_custom_call.1']
    #allocation10 [shape = 'u8[32768]{0}', space=vmem, size = 0x8000, scoped, tag = 'input window, operand 6, single buffered']
    #allocation11 [shape = 'u8[131072]{0}', space=vmem, size = 0x20000, scoped, tag = 'output window, operand 0']
    %13 = vsyncpa [#allocation3], 0
    %s14 = scalar_lea.sflag [#allocation3], 1
    %15 = vsyncpa %s14, 0
    %16 = vsyncpa [#allocation6], 0
    %s17 = scalar_lea.sflag [#allocation6], 1
    %18 = vsyncpa %s17, 0
    %19 = vsyncpa [#allocation9], 0
    %20 = vsyncpa [#allocation4], 0
    %s21 = scalar_lea.sflag [#allocation4], 1
    %22 = vsyncpa %s21, 0
    loop: start=0, step=1, limit=5
    $region2: #{tpu_custom_call.1} parent=1 // loop_pre_header
      _
    $region3: #{tpu_custom_call.1} parent=1 // loop_header
      %s24 = sphi 0, %s28
      %p25 = scmp.ge.s32.totalorder %s24, 5
      %s34 = sphi 0, %s36
      %s37 = sphi 0, %s34
      %s38 = sphi 0, %s37
      %s54 = sphi 0, %s38
      %s60 = sphi 0, %s62
      %s63 = sphi 0, %s60
      %s64 = sphi 0, %s63
      %s80 = sphi 0, %s64
      %s86 = sphi 0, %s88
      %s89 = sphi 0, %s86
      %s90 = sphi 0, %s89
      %s106 = sphi 0, %s90
      %s110 = sphi 0, %s110
      %s112 = sphi 0, %s110
      %s113 = sphi 0, %s112
      %s127 = sphi 0, %s113
      %s131 = sphi 0, %s131
      %s133 = sphi 0, %s131
      %s134 = sphi 0, %s133
      %s148 = sphi 0, %s134
      %s152 = sphi 0, %s152
      %s154 = sphi 0, %s152
      %s155 = sphi 0, %s154
      %s169 = sphi 0, %s155
      %s173 = sphi 0, %s173
      %s175 = sphi 0, %s173
      %s176 = sphi 0, %s175
      %s190 = sphi 0, %s176
      %s194 = sphi 0, %s194
      %s196 = sphi 0, %s194
      %s197 = sphi 0, %s196
      %s211 = sphi 0, %s197
      %s217 = sphi 0, %s219
      %s220 = sphi 0, %s217
      %s221 = sphi 0, %s220
      %s237 = sphi 0, %s221
    $region4: #{tpu_custom_call.1} parent=1 // loop_header_branch
      %27 = sbr.rel (%p25) target = $region8
    $region5: #{tpu_custom_call.1} parent=1 // loop_body
      %s29 = ssub.s32 %s24, 1
      %s30 = ssub.s32 %s24, 2
      %s31 = sadd.s32 %s24, 1
      %s32 = ssub.s32 %s24, %s31
      %p33 = scmp.eq.s32.totalorder %s32, 0
      %s35 = sadd.s32 %s34, 1
      %s36 = scalar_select %p33, %s34, %s35
      %p39 = pneg %p33
      %p40 = scmp.eq.s32.totalorder %s24, 2
      %p41 = por %p39, %p40
      %p42 = scmp.ne.s32.totalorder %s34, %s37
      %p43 = scmp.eq.s32.totalorder %s24, 0
      %p44 = por %p42, %p43
      %p45 = scmp.ne.s32.totalorder %s34, %s37
      %p46 = scmp.eq.s32.totalorder %s29, 2
      %p47 = por %p45, %p46
      %p48 = scmp.ne.s32.totalorder %s37, %s38
      %p49 = scmp.eq.s32.totalorder %s29, 0
      %p50 = por %p48, %p49
      %p51 = scmp.ne.s32.totalorder %s37, %s38
      %p52 = scmp.eq.s32.totalorder %s30, 2
      %p53 = por %p51, %p52
      %p55 = scmp.ne.s32.totalorder %s38, %s54
      %p56 = scmp.eq.s32.totalorder %s30, 0
      %p57 = por %p55, %p56
      %s58 = ssub.s32 %s24, %s31
      %p59 = scmp.eq.s32.totalorder %s58, 0
      %s61 = sadd.s32 %s60, 1
      %s62 = scalar_select %p59, %s60, %s61
      %p65 = pneg %p59
      %p66 = scmp.eq.s32.totalorder %s24, 2
      %p67 = por %p65, %p66
      %p68 = scmp.ne.s32.totalorder %s60, %s63
      %p69 = scmp.eq.s32.totalorder %s24, 0
      %p70 = por %p68, %p69
      %p71 = scmp.ne.s32.totalorder %s60, %s63
      %p72 = scmp.eq.s32.totalorder %s29, 2
      %p73 = por %p71, %p72
      %p74 = scmp.ne.s32.totalorder %s63, %s64
      %p75 = scmp.eq.s32.totalorder %s29, 0
      %p76 = por %p74, %p75
      %p77 = scmp.ne.s32.totalorder %s63, %s64
      %p78 = scmp.eq.s32.totalorder %s30, 2
      %p79 = por %p77, %p78
      %p81 = scmp.ne.s32.totalorder %s64, %s80
      %p82 = scmp.eq.s32.totalorder %s30, 0
      %p83 = por %p81, %p82
      %s84 = ssub.s32 %s24, %s31
      %p85 = scmp.eq.s32.totalorder %s84, 0
      %s87 = sadd.s32 %s86, 1
      %s88 = scalar_select %p85, %s86, %s87
      %p91 = pneg %p85
      %p92 = scmp.eq.s32.totalorder %s24, 2
      %p93 = por %p91, %p92
      %p94 = scmp.ne.s32.totalorder %s86, %s89
      %p95 = scmp.eq.s32.totalorder %s24, 0
      %p96 = por %p94, %p95
      %p97 = scmp.ne.s32.totalorder %s86, %s89
      %p98 = scmp.eq.s32.totalorder %s29, 2
      %p99 = por %p97, %p98
      %p100 = scmp.ne.s32.totalorder %s89, %s90
      %p101 = scmp.eq.s32.totalorder %s29, 0
      %p102 = por %p100, %p101
      %p103 = scmp.ne.s32.totalorder %s89, %s90
      %p104 = scmp.eq.s32.totalorder %s30, 2
      %p105 = por %p103, %p104
      %p107 = scmp.ne.s32.totalorder %s90, %s106
      %p108 = scmp.eq.s32.totalorder %s30, 0
      %p109 = por %p107, %p108
      %s111 = sadd.s32 %s110, 1
      %p114 = scmp.eq.s32.totalorder %s24, 2
      %p115 = scmp.ne.s32.totalorder %s110, %s112
      %p116 = scmp.eq.s32.totalorder %s24, 0
      %p117 = por %p115, %p116
      %p118 = scmp.ne.s32.totalorder %s110, %s112
      %p119 = scmp.eq.s32.totalorder %s29, 2
      %p120 = por %p118, %p119
      %p121 = scmp.ne.s32.totalorder %s112, %s113
      %p122 = scmp.eq.s32.totalorder %s29, 0
      %p123 = por %p121, %p122
      %p124 = scmp.ne.s32.totalorder %s112, %s113
      %p125 = scmp.eq.s32.totalorder %s30, 2
      %p126 = por %p124, %p125
      %p128 = scmp.ne.s32.totalorder %s113, %s127
      %p129 = scmp.eq.s32.totalorder %s30, 0
      %p130 = por %p128, %p129
      %s132 = sadd.s32 %s131, 1
      %p135 = scmp.eq.s32.totalorder %s24, 2
      %p136 = scmp.ne.s32.totalorder %s131, %s133
      %p137 = scmp.eq.s32.totalorder %s24, 0
      %p138 = por %p136, %p137
      %p139 = scmp.ne.s32.totalorder %s131, %s133
      %p140 = scmp.eq.s32.totalorder %s29, 2
      %p141 = por %p139, %p140
      %p142 = scmp.ne.s32.totalorder %s133, %s134
      %p143 = scmp.eq.s32.totalorder %s29, 0
      %p144 = por %p142, %p143
      %p145 = scmp.ne.s32.totalorder %s133, %s134
      %p146 = scmp.eq.s32.totalorder %s30, 2
      %p147 = por %p145, %p146
      %p149 = scmp.ne.s32.totalorder %s134, %s148
      %p150 = scmp.eq.s32.totalorder %s30, 0
      %p151 = por %p149, %p150
      %s153 = sadd.s32 %s152, 1
      %p156 = scmp.eq.s32.totalorder %s24, 2
      %p157 = scmp.ne.s32.totalorder %s152, %s154
      %p158 = scmp.eq.s32.totalorder %s24, 0
      %p159 = por %p157, %p158
      %p160 = scmp.ne.s32.totalorder %s152, %s154
      %p161 = scmp.eq.s32.totalorder %s29, 2
      %p162 = por %p160, %p161
      %p163 = scmp.ne.s32.totalorder %s154, %s155
      %p164 = scmp.eq.s32.totalorder %s29, 0
      %p165 = por %p163, %p164
      %p166 = scmp.ne.s32.totalorder %s154, %s155
      %p167 = scmp.eq.s32.totalorder %s30, 2
      %p168 = por %p166, %p167
      %p170 = scmp.ne.s32.totalorder %s155, %s169
      %p171 = scmp.eq.s32.totalorder %s30, 0
      %p172 = por %p170, %p171
      %s174 = sadd.s32 %s173, 1
      %p177 = scmp.eq.s32.totalorder %s24, 2
      %p178 = scmp.ne.s32.totalorder %s173, %s175
      %p179 = scmp.eq.s32.totalorder %s24, 0
      %p180 = por %p178, %p179
      %p181 = scmp.ne.s32.totalorder %s173, %s175
      %p182 = scmp.eq.s32.totalorder %s29, 2
      %p183 = por %p181, %p182
      %p184 = scmp.ne.s32.totalorder %s175, %s176
      %p185 = scmp.eq.s32.totalorder %s29, 0
      %p186 = por %p184, %p185
      %p187 = scmp.ne.s32.totalorder %s175, %s176
      %p188 = scmp.eq.s32.totalorder %s30, 2
      %p189 = por %p187, %p188
      %p191 = scmp.ne.s32.totalorder %s176, %s190
      %p192 = scmp.eq.s32.totalorder %s30, 0
      %p193 = por %p191, %p192
      %s195 = sadd.s32 %s194, 1
      %p198 = scmp.eq.s32.totalorder %s24, 2
      %p199 = scmp.ne.s32.totalorder %s194, %s196
      %p200 = scmp.eq.s32.totalorder %s24, 0
      %p201 = por %p199, %p200
      %p202 = scmp.ne.s32.totalorder %s194, %s196
      %p203 = scmp.eq.s32.totalorder %s29, 2
      %p204 = por %p202, %p203
      %p205 = scmp.ne.s32.totalorder %s196, %s197
      %p206 = scmp.eq.s32.totalorder %s29, 0
      %p207 = por %p205, %p206
      %p208 = scmp.ne.s32.totalorder %s196, %s197
      %p209 = scmp.eq.s32.totalorder %s30, 2
      %p210 = por %p208, %p209
      %p212 = scmp.ne.s32.totalorder %s197, %s211
      %p213 = scmp.eq.s32.totalorder %s30, 0
      %p214 = por %p212, %p213
      %s215 = ssub.s32 %s24, %s31
      %p216 = scmp.eq.s32.totalorder %s215, 0
      %s218 = sadd.s32 %s217, 1
      %s219 = scalar_select %p216, %s217, %s218
      %p222 = pneg %p216
      %p223 = scmp.eq.s32.totalorder %s24, 2
      %p224 = por %p222, %p223
      %p225 = scmp.ne.s32.totalorder %s217, %s220
      %p226 = scmp.eq.s32.totalorder %s24, 0
      %p227 = por %p225, %p226
      %p228 = scmp.ne.s32.totalorder %s217, %s220
      %p229 = scmp.eq.s32.totalorder %s29, 2
      %p230 = por %p228, %p229
      %p231 = scmp.ne.s32.totalorder %s220, %s221
      %p232 = scmp.eq.s32.totalorder %s29, 0
      %p233 = por %p231, %p232
      %p234 = scmp.ne.s32.totalorder %s220, %s221
      %p235 = scmp.eq.s32.totalorder %s30, 2
      %p236 = por %p234, %p235
      %p238 = scmp.ne.s32.totalorder %s221, %s237
      %p239 = scmp.eq.s32.totalorder %s30, 0
      %p240 = por %p238, %p239
      %p241 = scmp.le.s32.totalorder 1, %s24
      %p242 = scmp.lt.s32.totalorder %s24, 4
      %p243 = pnand %p241, %p242
      %p244 = pneg %p243
      // Predicated region
      $region9: #{tpu_custom_call.1} parent=5 // pred_check
        _
      $region10: #{tpu_custom_call.1} parent=5 // pred_check_branch
        %246 = sbr.rel (%p243) target = $region12
      $region11: #{tpu_custom_call.1} parent=5 // pred_region
        %s247 = ssub.s32 %s24, 1
        // Predicated region
        $region13: #{tpu_custom_call.1} parent=11 // pred_check
          %p248 = pneg %p123
        $region14: #{tpu_custom_call.1} parent=11 // pred_check_branch
          %250 = sbr.rel (%p248) target = $region16
        $region15: #{tpu_custom_call.1} parent=11 // pred_region
          %s252 = ssub.s32 1024, 1024
          %253 = vsyncadd [#allocation6], %s252
          %s254 = sshll.u32 [#allocation7], 4
          %s255 = int_to_ptr.vmem [resolvable:$true] %s254
          %260 = dma.hbm_to_vmem [thread:$0]  %s3, 1024, %s255, [#allocation6], 64, 64, 4
        $region16: #{tpu_custom_call.1} parent=11 // pred_fallthru
          _
        // Predicated region
        $region17: #{tpu_custom_call.1} parent=11 // pred_check
          %p261 = pneg %p144
        $region18: #{tpu_custom_call.1} parent=11 // pred_check_branch
          %263 = sbr.rel (%p261) target = $region20
        $region19: #{tpu_custom_call.1} parent=11 // pred_region
          %s265 = ssub.s32 1024, 1024
          %266 = vsyncadd [#allocation9], %s265
          %s267 = sshll.u32 [#allocation8], 4
          %s268 = int_to_ptr.vmem [resolvable:$true] %s267
          %273 = dma.hbm_to_vmem [thread:$0]  %s4, 1024, %s268, [#allocation9], 64, 64, 4
        $region20: #{tpu_custom_call.1} parent=11 // pred_fallthru
          _
        // Predicated region
        $region21: #{tpu_custom_call.1} parent=11 // pred_check
          %p274 = pneg %p165
        $region22: #{tpu_custom_call.1} parent=11 // pred_check_branch
          %276 = sbr.rel (%p274) target = $region24
        $region23: #{tpu_custom_call.1} parent=11 // pred_region
          _
        $region24: #{tpu_custom_call.1} parent=11 // pred_fallthru
          _
        // Predicated region
        $region25: #{tpu_custom_call.1} parent=11 // pred_check
          %p277 = pneg %p186
        $region26: #{tpu_custom_call.1} parent=11 // pred_check_branch
          %279 = sbr.rel (%p277) target = $region28
        $region27: #{tpu_custom_call.1} parent=11 // pred_region
          %s281 = ssub.s32 1024, 1024
          %282 = vsyncadd [#allocation9], %s281
          %s283 = sshll.u32 [#allocation10], 4
          %s284 = int_to_ptr.vmem [resolvable:$true] %s283
          %289 = dma.hbm_to_vmem [thread:$0]  %s6, 1024, %s284, [#allocation9], 64, 64, 4
        $region28: #{tpu_custom_call.1} parent=11 // pred_fallthru
          _
        // Predicated region
        $region29: #{tpu_custom_call.1} parent=11 // pred_check
          %p290 = pneg %p207
        $region30: #{tpu_custom_call.1} parent=11 // pred_check_branch
          %292 = sbr.rel (%p290) target = $region32
        $region31: #{tpu_custom_call.1} parent=11 // pred_region
          _
        $region32: #{tpu_custom_call.1} parent=11 // pred_fallthru
          _
      $region12: #{tpu_custom_call.1} parent=5 // pred_fallthru
        _
      %p293 = scmp.lt.s32.totalorder %s24, 3
      // Predicated region
      $region33: #{tpu_custom_call.1} parent=5 // pred_check
        %p294 = pneg %p293
      $region34: #{tpu_custom_call.1} parent=5 // pred_check_branch
        %296 = sbr.rel (%p294) target = $region36
      $region35: #{tpu_custom_call.1} parent=5 // pred_region
        // Predicated region
        $region37: #{tpu_custom_call.1} parent=35 // pred_check
          %p297 = pneg %p44
        $region38: #{tpu_custom_call.1} parent=35 // pred_check_branch
          %299 = sbr.rel (%p297) target = $region40
        $region39: #{tpu_custom_call.1} parent=35 // pred_region
          %s300 = sand.u32 %s34, 1
          %s301 = scalar_lea.sflag [#allocation3], %s300
          %s302 = sand.u32 %s34, 1
          %s303 = smul.addr %s302, 64
          %s304 = scalar_lea.vmem [#allocation2], %s303
          %s306 = ssub.s32 1024, 1024
          %307 = vsyncadd %s301, %s306
          %s308 = smul.addr %s24, 16
          %s309 = smul.addr %s308, 64
          %s310 = scalar_lea.hbm %s0, %s309
          %s311 = sshll.u32 %s304, 4
          %s312 = int_to_ptr.vmem [resolvable:$true] %s311
          %317 = dma.hbm_to_vmem [thread:$0]  %s310, 1024, %s312, %s301, 64, 64, 4
        $region40: #{tpu_custom_call.1} parent=35 // pred_fallthru
          _
        // Predicated region
        $region41: #{tpu_custom_call.1} parent=35 // pred_check
          %p318 = pneg %p70
        $region42: #{tpu_custom_call.1} parent=35 // pred_check_branch
          %320 = sbr.rel (%p318) target = $region44
        $region43: #{tpu_custom_call.1} parent=35 // pred_region
          %s321 = sand.u32 %s24, 1
          %s322 = scalar_lea.sflag [#allocation6], %s321
          %s323 = sand.u32 %s60, 1
          %s324 = smul.addr %s323, 64
          %s325 = scalar_lea.vmem [#allocation5], %s324
          %s327 = ssub.s32 1024, 1024
          %328 = vsyncadd %s322, %s327
          %s329 = smul.addr %s24, 16
          %s330 = smul.addr %s329, 64
          %s331 = scalar_lea.hbm %s1, %s330
          %s332 = sshll.u32 %s325, 4
          %s333 = int_to_ptr.vmem [resolvable:$true] %s332
          %338 = dma.hbm_to_vmem [thread:$0]  %s331, 1024, %s333, %s322, 64, 64, 4
        $region44: #{tpu_custom_call.1} parent=35 // pred_fallthru
          _
        // Predicated region
        $region45: #{tpu_custom_call.1} parent=35 // pred_check
          %p339 = pneg %p96
        $region46: #{tpu_custom_call.1} parent=35 // pred_check_branch
          %341 = sbr.rel (%p339) target = $region48
        $region47: #{tpu_custom_call.1} parent=35 // pred_region
          %p342 = scmp.lt.s32.totalorder %s24, 2
          %s343 = scalar_select %p342, %s24, 2
          %s344 = scalar_lea.vmem %s2, %s343
        $region48: #{tpu_custom_call.1} parent=35 // pred_fallthru
          _
      $region36: #{tpu_custom_call.1} parent=5 // pred_fallthru
        _
      %p345 = scmp.le.s32.totalorder 1, %s24
      %p346 = scmp.lt.s32.totalorder %s24, 4
      %p347 = pnand %p345, %p346
      %p348 = pneg %p347
      // Predicated region
      $region49: #{tpu_custom_call.1} parent=5 // pred_check
        _
      $region50: #{tpu_custom_call.1} parent=5 // pred_check_branch
        %350 = sbr.rel (%p347) target = $region52
      $region51: #{tpu_custom_call.1} parent=5 // pred_region
        %s351 = ssub.s32 %s24, 1
        %s352 = sand.u32 %s37, 1
        %s353 = scalar_lea.sflag [#allocation3], %s352
        %s354 = sand.u32 %s37, 1
        %s355 = smul.addr %s354, 64
        %s356 = scalar_lea.vmem [#allocation2], %s355
        // Predicated region
        $region53: #{tpu_custom_call.1} parent=51 // pred_check
          %p357 = pneg %p50
        $region54: #{tpu_custom_call.1} parent=51 // pred_check_branch
          %359 = sbr.rel (%p357) target = $region56
        $region55: #{tpu_custom_call.1} parent=51 // pred_region
          %360 = dma.done %s353, 1024
        $region56: #{tpu_custom_call.1} parent=51 // pred_fallthru
          _
        %s361 = sand.u32 %s29, 1
        %s362 = scalar_lea.sflag [#allocation6], %s361
        %s363 = sand.u32 %s63, 1
        %s364 = smul.addr %s363, 64
        %s365 = scalar_lea.vmem [#allocation5], %s364
        // Predicated region
        $region57: #{tpu_custom_call.1} parent=51 // pred_check
          %p366 = pneg %p76
        $region58: #{tpu_custom_call.1} parent=51 // pred_check_branch
          %368 = sbr.rel (%p366) target = $region60
        $region59: #{tpu_custom_call.1} parent=51 // pred_region
          %369 = dma.done %s362, 1024
        $region60: #{tpu_custom_call.1} parent=51 // pred_fallthru
          _
        // Predicated region
        $region61: #{tpu_custom_call.1} parent=51 // pred_check
          %p370 = pneg %p123
        $region62: #{tpu_custom_call.1} parent=51 // pred_check_branch
          %372 = sbr.rel (%p370) target = $region64
        $region63: #{tpu_custom_call.1} parent=51 // pred_region
          %373 = dma.done [#allocation6], 1024
        $region64: #{tpu_custom_call.1} parent=51 // pred_fallthru
          _
        // Predicated region
        $region65: #{tpu_custom_call.1} parent=51 // pred_check
          %p374 = pneg %p144
        $region66: #{tpu_custom_call.1} parent=51 // pred_check_branch
          %376 = sbr.rel (%p374) target = $region68
        $region67: #{tpu_custom_call.1} parent=51 // pred_region
          %377 = dma.done [#allocation9], 1024
        $region68: #{tpu_custom_call.1} parent=51 // pred_fallthru
          _
        // Predicated region
        $region69: #{tpu_custom_call.1} parent=51 // pred_check
          %p378 = pneg %p186
        $region70: #{tpu_custom_call.1} parent=51 // pred_check_branch
          %380 = sbr.rel (%p378) target = $region72
        $region71: #{tpu_custom_call.1} parent=51 // pred_region
          %381 = dma.done [#allocation9], 1024
        $region72: #{tpu_custom_call.1} parent=51 // pred_fallthru
          _
        %s382 = sand.u32 %s37, 1
        %s383 = scalar_lea.sflag [#allocation3], %s382
        %s384 = sand.u32 %s37, 1
        %s385 = smul.addr %s384, 64
        %s386 = scalar_lea.vmem [#allocation2], %s385
        %p387 = pneg %p50
        %p388 = pneg %p47
        %s389 = sand.u32 %s29, 1
        %s390 = scalar_lea.sflag [#allocation6], %s389
        %s391 = sand.u32 %s63, 1
        %s392 = smul.addr %s391, 64
        %s393 = scalar_lea.vmem [#allocation5], %s392
        %p394 = pneg %p76
        %p395 = pneg %p73
        %p396 = scmp.lt.s32.totalorder %s29, 2
        %s397 = scalar_select %p396, %s29, 2
        %s398 = scalar_lea.vmem %s2, %s397
        %p399 = pneg %p102
        %p400 = pneg %p99
        %p401 = pneg %p123
        %p402 = pneg %p120
        %p403 = pneg %p144
        %p404 = pneg %p141
        %p405 = pneg %p165
        %p406 = pneg %p162
        %p407 = pneg %p186
        %p408 = pneg %p183
        %p409 = pneg %p207
        %p410 = pneg %p204
        %p411 = pneg %p233
        %p412 = pneg %p230
        %s413 = sand.u32 %s220, 1
        %s414 = scalar_lea.sflag [#allocation4], %s413
        %s415 = sand.u32 %s220, 1
        %s416 = smul.addr %s415, 128
        %s417 = scalar_lea.vmem [#allocation11], %s416
        %p418 = scmp.lt.s32.totalorder %s29, 2
        %s419 = scalar_select %p418, %s29, 2
        %s420 = scalar_lea.vmem %s2, %s419
        %v422 = vld [vmem:[#allocation7] sm:$0xf]
        %v423 = vld [vmem:[#allocation7 + $0x4] sm:$0xf]
        %v424 = vld [vmem:[#allocation7 + $0x8] sm:$0xf]
        %v425 = vld [vmem:[#allocation7 + $0xc] sm:$0xf]
        %v426 = vld [vmem:[#allocation7 + $0x10] sm:$0xf]
        %v427 = vld [vmem:[#allocation7 + $0x14] sm:$0xf]
        %v428 = vld [vmem:[#allocation7 + $0x18] sm:$0xf]
        %v429 = vld [vmem:[#allocation7 + $0x1c] sm:$0xf]
        %v430 = vld [vmem:[#allocation7 + $0x20] sm:$0xf]
        %v431 = vld [vmem:[#allocation7 + $0x24] sm:$0xf]
        %v432 = vld [vmem:[#allocation7 + $0x28] sm:$0xf]
        %v433 = vld [vmem:[#allocation7 + $0x2c] sm:$0xf]
        %v434 = vld [vmem:[#allocation7 + $0x30] sm:$0xf]
        %v435 = vld [vmem:[#allocation7 + $0x34] sm:$0xf]
        %v436 = vld [vmem:[#allocation7 + $0x38] sm:$0xf]
        %v437 = vld [vmem:[#allocation7 + $0x3c] sm:$0xf]
        %v438 = vld [vmem:[%s365] sm:$0xf]
        %v439 = vld [vmem:[%s365 + $0x4] sm:$0xf]
        %v440 = vld [vmem:[%s365 + $0x8] sm:$0xf]
        %v441 = vld [vmem:[%s365 + $0xc] sm:$0xf]
        %v442 = vld [vmem:[%s365 + $0x10] sm:$0xf]
        %v443 = vld [vmem:[%s365 + $0x14] sm:$0xf]
        %v444 = vld [vmem:[%s365 + $0x18] sm:$0xf]
        %v445 = vld [vmem:[%s365 + $0x1c] sm:$0xf]
        %v446 = vld [vmem:[%s365 + $0x20] sm:$0xf]
        %v447 = vld [vmem:[%s365 + $0x24] sm:$0xf]
        %v448 = vld [vmem:[%s365 + $0x28] sm:$0xf]
        %v449 = vld [vmem:[%s365 + $0x2c] sm:$0xf]
        %v450 = vld [vmem:[%s365 + $0x30] sm:$0xf]
        %v451 = vld [vmem:[%s365 + $0x34] sm:$0xf]
        %v452 = vld [vmem:[%s365 + $0x38] sm:$0xf]
        %v453 = vld [vmem:[%s365 + $0x3c] sm:$0xf]
        %v470 = vunpack.c.l.b16 %v422
        %v471 = vunpack.c.l.b16 %v423
        %v472 = vunpack.c.l.b16 %v424
        %v473 = vunpack.c.l.b16 %v425
        %v474 = vunpack.c.l.b16 %v426
        %v475 = vunpack.c.l.b16 %v427
        %v476 = vunpack.c.l.b16 %v428
        %v477 = vunpack.c.l.b16 %v429
        %v478 = vunpack.c.l.b16 %v430
        %v479 = vunpack.c.l.b16 %v431
        %v480 = vunpack.c.l.b16 %v432
        %v481 = vunpack.c.l.b16 %v433
        %v482 = vunpack.c.l.b16 %v434
        %v483 = vunpack.c.l.b16 %v435
        %v484 = vunpack.c.l.b16 %v436
        %v485 = vunpack.c.l.b16 %v437
        %v486 = vpack.c.b16 %v471, %v470
        %v487 = vpack.c.b16 %v473, %v472
        %v488 = vpack.c.b16 %v475, %v474
        %v489 = vpack.c.b16 %v477, %v476
        %v490 = vpack.c.b16 %v479, %v478
        %v491 = vpack.c.b16 %v481, %v480
        %v492 = vpack.c.b16 %v483, %v482
        %v493 = vpack.c.b16 %v485, %v484
        %v518 = vunpack.c.l.b16 %v438
        %v519 = vunpack.c.l.b16 %v439
        %v520 = vunpack.c.l.b16 %v440
        %v521 = vunpack.c.l.b16 %v441
        %v522 = vunpack.c.l.b16 %v442
        %v523 = vunpack.c.l.b16 %v443
        %v524 = vunpack.c.l.b16 %v444
        %v525 = vunpack.c.l.b16 %v445
        %v526 = vunpack.c.l.b16 %v446
        %v527 = vunpack.c.l.b16 %v447
        %v528 = vunpack.c.l.b16 %v448
        %v529 = vunpack.c.l.b16 %v449
        %v530 = vunpack.c.l.b16 %v450
        %v531 = vunpack.c.l.b16 %v451
        %v532 = vunpack.c.l.b16 %v452
        %v533 = vunpack.c.l.b16 %v453
        %v534 = vpack.c.b16 %v519, %v518
        %v535 = vpack.c.b16 %v521, %v520
        %v536 = vpack.c.b16 %v523, %v522
        %v537 = vpack.c.b16 %v525, %v524
        %v538 = vpack.c.b16 %v527, %v526
        %v539 = vpack.c.b16 %v529, %v528
        %v540 = vpack.c.b16 %v531, %v530
        %v541 = vpack.c.b16 %v533, %v532
        %550 = vmatprep.subr.bf16.mxu0 0
        %551 = vmatpush1.bf16.msra.mxu0 %v534
        %552 = vmatprep.subr.bf16.mxu0 0
        %553 = vmatpush1.bf16.msra.mxu0 %v535
        %554 = vmatprep.subr.bf16.mxu0 0
        %555 = vmatpush1.bf16.msra.mxu0 %v536
        %556 = vmatprep.subr.bf16.mxu0 0
        %557 = vmatpush1.bf16.msra.mxu0 %v537
        %558 = vmatprep.subr.bf16.mxu0 0
        %559 = vmatpush1.bf16.msra.mxu0 %v538
        %560 = vmatprep.subr.bf16.mxu0 0
        %561 = vmatpush1.bf16.msra.mxu0 %v539
        %562 = vmatprep.subr.bf16.mxu0 0
        %563 = vmatpush1.bf16.msra.mxu0 %v540
        %564 = vmatprep.subr.bf16.mxu0 0
        %565 = vmatpush1.bf16.msra.mxu0 %v541
        %566 = vmatprep.subr.bf16.mxu0 0
        %567 = vmatpush1.bf16.msra.mxu0 0
        %568 = vmatprep.subr.bf16.mxu0 0
        %569 = vmatpush1.bf16.msra.mxu0 0
        %570 = vmatprep.subr.bf16.mxu0 0
        %571 = vmatpush1.bf16.msra.mxu0 0
        %572 = vmatprep.subr.bf16.mxu0 0
        %573 = vmatpush1.bf16.msra.mxu0 0
        %574 = vmatprep.subr.bf16.mxu0 0
        %575 = vmatpush1.bf16.msra.mxu0 0
        %576 = vmatprep.subr.bf16.mxu0 0
        %577 = vmatpush1.bf16.msra.mxu0 0
        %578 = vmatprep.subr.bf16.mxu0 0
        %579 = vmatpush1.bf16.msra.mxu0 0
        %580 = vmatprep.subr.bf16.mxu0 0
        %581 = vmatpush1.bf16.msra.mxu0 0
        %582 = vmatprep.mubr.bf16.mxu0 0
        %583 = vmatmul.mubr.bf16.gmra.mrb[0].mxu0 %v486
        %v584 = vpop.f32.mrb[0].mxu0
        %v585 = vadd.f32 0.0, %v584
        %v586 = vpop.f32.mrb[0].mxu0
        %v587 = vpop.f32.mrb[0].mxu0
        %v588 = vadd.f32 0.0, %v587
        %v589 = vpop.f32.mrb[0].mxu0
        %590 = vmatprep.mubr.bf16.mxu0 0
        %591 = vmatmul.mubr.bf16.gmra.mrb[0].mxu0 %v487
        %v592 = vpop.f32.mrb[0].mxu0
        %v593 = vadd.f32 0.0, %v592
        %v594 = vpop.f32.mrb[0].mxu0
        %v595 = vpop.f32.mrb[0].mxu0
        %v596 = vadd.f32 0.0, %v595
        %v597 = vpop.f32.mrb[0].mxu0
        %598 = vmatprep.mubr.bf16.mxu0 0
        %599 = vmatmul.mubr.bf16.gmra.mrb[0].mxu0 %v488
        %v600 = vpop.f32.mrb[0].mxu0
        %v601 = vadd.f32 0.0, %v600
        %v602 = vpop.f32.mrb[0].mxu0
        %v603 = vpop.f32.mrb[0].mxu0
        %v604 = vadd.f32 0.0, %v603
        %v605 = vpop.f32.mrb[0].mxu0
        %606 = vmatprep.mubr.bf16.mxu0 0
        %607 = vmatmul.mubr.bf16.gmra.mrb[0].mxu0 %v489
        %v608 = vpop.f32.mrb[0].mxu0
        %v609 = vadd.f32 0.0, %v608
        %v610 = vpop.f32.mrb[0].mxu0
        %v611 = vpop.f32.mrb[0].mxu0
        %v612 = vadd.f32 0.0, %v611
        %v613 = vpop.f32.mrb[0].mxu0
        %614 = vmatprep.mubr.bf16.mxu0 0
        %615 = vmatmul.mubr.bf16.gmra.mrb[0].mxu0 %v490
        %v616 = vpop.f32.mrb[0].mxu0
        %v617 = vadd.f32 0.0, %v616
        %v618 = vpop.f32.mrb[0].mxu0
        %v619 = vpop.f32.mrb[0].mxu0
        %v620 = vadd.f32 0.0, %v619
        %v621 = vpop.f32.mrb[0].mxu0
        %622 = vmatprep.mubr.bf16.mxu0 0
        %623 = vmatmul.mubr.bf16.gmra.mrb[0].mxu0 %v491
        %v624 = vpop.f32.mrb[0].mxu0
        %v625 = vadd.f32 0.0, %v624
        %v626 = vpop.f32.mrb[0].mxu0
        %v627 = vpop.f32.mrb[0].mxu0
        %v628 = vadd.f32 0.0, %v627
        %v629 = vpop.f32.mrb[0].mxu0
        %630 = vmatprep.mubr.bf16.mxu0 0
        %631 = vmatmul.mubr.bf16.gmra.mrb[0].mxu0 %v492
        %v632 = vpop.f32.mrb[0].mxu0
        %v633 = vadd.f32 0.0, %v632
        %v634 = vpop.f32.mrb[0].mxu0
        %v635 = vpop.f32.mrb[0].mxu0
        %v636 = vadd.f32 0.0, %v635
        %v637 = vpop.f32.mrb[0].mxu0
        %638 = vmatprep.mubr.bf16.mxu0 0
        %639 = vmatmul.mubr.bf16.gmra.mrb[0].mxu0 %v493
        %v640 = vpop.f32.mrb[0].mxu0
        %v641 = vadd.f32 0.0, %v640
        %v642 = vpop.f32.mrb[0].mxu0
        %v643 = vpop.f32.mrb[0].mxu0
        %v644 = vadd.f32 0.0, %v643
        %v645 = vpop.f32.mrb[0].mxu0
        %646 = vdwg.mxu0
        %v647 = vld [vmem:[%s356] sm:$0xf]
        %v648 = vld [vmem:[%s356 + $0x4] sm:$0xf]
        %v649 = vld [vmem:[%s356 + $0x8] sm:$0xf]
        %v650 = vld [vmem:[%s356 + $0xc] sm:$0xf]
        %v651 = vld [vmem:[%s356 + $0x10] sm:$0xf]
        %v652 = vld [vmem:[%s356 + $0x14] sm:$0xf]
        %v653 = vld [vmem:[%s356 + $0x18] sm:$0xf]
        %v654 = vld [vmem:[%s356 + $0x1c] sm:$0xf]
        %v655 = vld [vmem:[%s356 + $0x20] sm:$0xf]
        %v656 = vld [vmem:[%s356 + $0x24] sm:$0xf]
        %v657 = vld [vmem:[%s356 + $0x28] sm:$0xf]
        %v658 = vld [vmem:[%s356 + $0x2c] sm:$0xf]
        %v659 = vld [vmem:[%s356 + $0x30] sm:$0xf]
        %v660 = vld [vmem:[%s356 + $0x34] sm:$0xf]
        %v661 = vld [vmem:[%s356 + $0x38] sm:$0xf]
        %v662 = vld [vmem:[%s356 + $0x3c] sm:$0xf]
        %v663 = vpack.c.bf16 %v588, %v585
        %v664 = vpack.c.bf16 %v596, %v593
        %v665 = vpack.c.bf16 %v604, %v601
        %v666 = vpack.c.bf16 %v612, %v609
        %v667 = vpack.c.bf16 %v620, %v617
        %v668 = vpack.c.bf16 %v628, %v625
        %v669 = vpack.c.bf16 %v636, %v633
        %v670 = vpack.c.bf16 %v644, %v641
        %v671 = vld [vmem:[%s420] sm:$0x1]
        %v673 = vlaneseq
        %v674 = vshrl.u32 %v673, 7
        %v675 = vsub.s32 0, %v674
        %v676 = vrot.slane %v671, %v675
        %v694 = vunpack.c.l.b16 %v647
        %v695 = vunpack.c.l.b16 %v648
        %v696 = vunpack.c.l.b16 %v649
        %v697 = vunpack.c.l.b16 %v650
        %v698 = vunpack.c.l.b16 %v651
        %v699 = vunpack.c.l.b16 %v652
        %v700 = vunpack.c.l.b16 %v653
        %v701 = vunpack.c.l.b16 %v654
        %v702 = vunpack.c.l.b16 %v655
        %v703 = vunpack.c.l.b16 %v656
        %v704 = vunpack.c.l.b16 %v657
        %v705 = vunpack.c.l.b16 %v658
        %v706 = vunpack.c.l.b16 %v659
        %v707 = vunpack.c.l.b16 %v660
        %v708 = vunpack.c.l.b16 %v661
        %v709 = vunpack.c.l.b16 %v662
        %v710 = vpack.c.b16 %v695, %v694
        %v711 = vpack.c.b16 %v697, %v696
        %v712 = vpack.c.b16 %v699, %v698
        %v713 = vpack.c.b16 %v701, %v700
        %v714 = vpack.c.b16 %v703, %v702
        %v715 = vpack.c.b16 %v705, %v704
        %v716 = vpack.c.b16 %v707, %v706
        %v717 = vpack.c.b16 %v709, %v708
        %726 = vmatprep.subr.bf16.mxu0 0
        %727 = vmatpush1.bf16.msra.mxu0 %v663
        %728 = vmatprep.subr.bf16.mxu0 0
        %729 = vmatpush1.bf16.msra.mxu0 %v664
        %730 = vmatprep.subr.bf16.mxu0 0
        %731 = vmatpush1.bf16.msra.mxu0 %v665
        %732 = vmatprep.subr.bf16.mxu0 0
        %733 = vmatpush1.bf16.msra.mxu0 %v666
        %734 = vmatprep.subr.bf16.mxu0 0
        %735 = vmatpush1.bf16.msra.mxu0 %v667
        %736 = vmatprep.subr.bf16.mxu0 0
        %737 = vmatpush1.bf16.msra.mxu0 %v668
        %738 = vmatprep.subr.bf16.mxu0 0
        %739 = vmatpush1.bf16.msra.mxu0 %v669
        %740 = vmatprep.subr.bf16.mxu0 0
        %741 = vmatpush1.bf16.msra.mxu0 %v670
        %742 = vmatprep.subr.bf16.mxu0 0
        %743 = vmatpush1.bf16.msra.mxu0 0
        %744 = vmatprep.subr.bf16.mxu0 0
        %745 = vmatpush1.bf16.msra.mxu0 0
        %746 = vmatprep.subr.bf16.mxu0 0
        %747 = vmatpush1.bf16.msra.mxu0 0
        %748 = vmatprep.subr.bf16.mxu0 0
        %749 = vmatpush1.bf16.msra.mxu0 0
        %750 = vmatprep.subr.bf16.mxu0 0
        %751 = vmatpush1.bf16.msra.mxu0 0
        %752 = vmatprep.subr.bf16.mxu0 0
        %753 = vmatpush1.bf16.msra.mxu0 0
        %754 = vmatprep.subr.bf16.mxu0 0
        %755 = vmatpush1.bf16.msra.mxu0 0
        %756 = vmatprep.subr.bf16.mxu0 0
        %757 = vmatpush1.bf16.msra.mxu0 0
        %758 = vmatprep.mubr.bf16.mxu0 0
        %759 = vmatmul.mubr.bf16.gmra.mrb[0].mxu0 %v710
        %v760 = vpop.f32.mrb[0].mxu0
        %v761 = vadd.f32 %v676, %v760
        %v762 = vpop.f32.mrb[0].mxu0
        %v763 = vpop.f32.mrb[0].mxu0
        %v764 = vadd.f32 %v676, %v763
        %v765 = vpop.f32.mrb[0].mxu0
        %766 = vmatprep.mubr.bf16.mxu0 0
        %767 = vmatmul.mubr.bf16.gmra.mrb[0].mxu0 %v711
        %v768 = vpop.f32.mrb[0].mxu0
        %v769 = vadd.f32 %v676, %v768
        %v770 = vpop.f32.mrb[0].mxu0
        %v771 = vpop.f32.mrb[0].mxu0
        %v772 = vadd.f32 %v676, %v771
        %v773 = vpop.f32.mrb[0].mxu0
        %774 = vmatprep.mubr.bf16.mxu0 0
        %775 = vmatmul.mubr.bf16.gmra.mrb[0].mxu0 %v712
        %v776 = vpop.f32.mrb[0].mxu0
        %v777 = vadd.f32 %v676, %v776
        %v778 = vpop.f32.mrb[0].mxu0
        %v779 = vpop.f32.mrb[0].mxu0
        %v780 = vadd.f32 %v676, %v779
        %v781 = vpop.f32.mrb[0].mxu0
        %782 = vmatprep.mubr.bf16.mxu0 0
        %783 = vmatmul.mubr.bf16.gmra.mrb[0].mxu0 %v713
        %v784 = vpop.f32.mrb[0].mxu0
        %v785 = vadd.f32 %v676, %v784
        %v786 = vpop.f32.mrb[0].mxu0
        %v787 = vpop.f32.mrb[0].mxu0
        %v788 = vadd.f32 %v676, %v787
        %v789 = vpop.f32.mrb[0].mxu0
        %790 = vmatprep.mubr.bf16.mxu0 0
        %791 = vmatmul.mubr.bf16.gmra.mrb[0].mxu0 %v714
        %v792 = vpop.f32.mrb[0].mxu0
        %v793 = vadd.f32 %v676, %v792
        %v794 = vpop.f32.mrb[0].mxu0
        %v795 = vpop.f32.mrb[0].mxu0
        %v796 = vadd.f32 %v676, %v795
        %v797 = vpop.f32.mrb[0].mxu0
        %798 = vmatprep.mubr.bf16.mxu0 0
        %799 = vmatmul.mubr.bf16.gmra.mrb[0].mxu0 %v715
        %v800 = vpop.f32.mrb[0].mxu0
        %v801 = vadd.f32 %v676, %v800
        %v802 = vpop.f32.mrb[0].mxu0
        %v803 = vpop.f32.mrb[0].mxu0
        %v804 = vadd.f32 %v676, %v803
        %v805 = vpop.f32.mrb[0].mxu0
        %806 = vmatprep.mubr.bf16.mxu0 0
        %807 = vmatmul.mubr.bf16.gmra.mrb[0].mxu0 %v716
        %v808 = vpop.f32.mrb[0].mxu0
        %v809 = vadd.f32 %v676, %v808
        %v810 = vpop.f32.mrb[0].mxu0
        %v811 = vpop.f32.mrb[0].mxu0
        %v812 = vadd.f32 %v676, %v811
        %v813 = vpop.f32.mrb[0].mxu0
        %814 = vmatprep.mubr.bf16.mxu0 0
        %815 = vmatmul.mubr.bf16.gmra.mrb[0].mxu0 %v717
        %v816 = vpop.f32.mrb[0].mxu0
        %v817 = vadd.f32 %v676, %v816
        %v818 = vpop.f32.mrb[0].mxu0
        %v819 = vpop.f32.mrb[0].mxu0
        %v820 = vadd.f32 %v676, %v819
        %v821 = vpop.f32.mrb[0].mxu0
        %822 = vdwg.mxu0
        %vm823 = vcmp.gt.f32.partialorder %v761, 0.0
        %vm824 = vcmp.gt.f32.partialorder %v764, 0.0
        %vm825 = vcmp.gt.f32.partialorder %v769, 0.0
        %vm826 = vcmp.gt.f32.partialorder %v772, 0.0
        %vm827 = vcmp.gt.f32.partialorder %v777, 0.0
        %vm828 = vcmp.gt.f32.partialorder %v780, 0.0
        %vm829 = vcmp.gt.f32.partialorder %v785, 0.0
        %vm830 = vcmp.gt.f32.partialorder %v788, 0.0
        %vm831 = vcmp.gt.f32.partialorder %v793, 0.0
        %vm832 = vcmp.gt.f32.partialorder %v796, 0.0
        %vm833 = vcmp.gt.f32.partialorder %v801, 0.0
        %vm834 = vcmp.gt.f32.partialorder %v804, 0.0
        %vm835 = vcmp.gt.f32.partialorder %v809, 0.0
        %vm836 = vcmp.gt.f32.partialorder %v812, 0.0
        %vm837 = vcmp.gt.f32.partialorder %v817, 0.0
        %vm838 = vcmp.gt.f32.partialorder %v820, 0.0
        %v839 = vmul.f32 %v761, 0.25
        %v840 = vmul.f32 %v764, 0.25
        %v841 = vmul.f32 %v769, 0.25
        %v842 = vmul.f32 %v772, 0.25
        %v843 = vmul.f32 %v777, 0.25
        %v844 = vmul.f32 %v780, 0.25
        %v845 = vmul.f32 %v785, 0.25
        %v846 = vmul.f32 %v788, 0.25
        %v847 = vmul.f32 %v793, 0.25
        %v848 = vmul.f32 %v796, 0.25
        %v849 = vmul.f32 %v801, 0.25
        %v850 = vmul.f32 %v804, 0.25
        %v851 = vmul.f32 %v809, 0.25
        %v852 = vmul.f32 %v812, 0.25
        %v853 = vmul.f32 %v817, 0.25
        %v854 = vmul.f32 %v820, 0.25
        %v855 = vsel %vm823, %v761, %v839
        %v856 = vsel %vm824, %v764, %v840
        %v857 = vsel %vm825, %v769, %v841
        %v858 = vsel %vm826, %v772, %v842
        %v859 = vsel %vm827, %v777, %v843
        %v860 = vsel %vm828, %v780, %v844
        %v861 = vsel %vm829, %v785, %v845
        %v862 = vsel %vm830, %v788, %v846
        %v863 = vsel %vm831, %v793, %v847
        %v864 = vsel %vm832, %v796, %v848
        %v865 = vsel %vm833, %v801, %v849
        %v866 = vsel %vm834, %v804, %v850
        %v867 = vsel %vm835, %v809, %v851
        %v868 = vsel %vm836, %v812, %v852
        %v869 = vsel %vm837, %v817, %v853
        %v870 = vsel %vm838, %v820, %v854
        %v871 = vpack.c.bf16 %v856, %v855
        %v872 = vpack.c.bf16 %v858, %v857
        %v873 = vpack.c.bf16 %v860, %v859
        %v874 = vpack.c.bf16 %v862, %v861
        %v875 = vpack.c.bf16 %v864, %v863
        %v876 = vpack.c.bf16 %v866, %v865
        %v877 = vpack.c.bf16 %v868, %v867
        %v878 = vpack.c.bf16 %v870, %v869
        %v879 = vld [vmem:[#allocation8] sm:$0xf]
        %v880 = vld [vmem:[#allocation8 + $0x4] sm:$0xf]
        %v881 = vld [vmem:[#allocation8 + $0x8] sm:$0xf]
        %v882 = vld [vmem:[#allocation8 + $0xc] sm:$0xf]
        %v883 = vld [vmem:[#allocation8 + $0x10] sm:$0xf]
        %v884 = vld [vmem:[#allocation8 + $0x14] sm:$0xf]
        %v885 = vld [vmem:[#allocation8 + $0x18] sm:$0xf]
        %v886 = vld [vmem:[#allocation8 + $0x1c] sm:$0xf]
        %v887 = vld [vmem:[#allocation8 + $0x20] sm:$0xf]
        %v888 = vld [vmem:[#allocation8 + $0x24] sm:$0xf]
        %v889 = vld [vmem:[#allocation8 + $0x28] sm:$0xf]
        %v890 = vld [vmem:[#allocation8 + $0x2c] sm:$0xf]
        %v891 = vld [vmem:[#allocation8 + $0x30] sm:$0xf]
        %v892 = vld [vmem:[#allocation8 + $0x34] sm:$0xf]
        %v893 = vld [vmem:[#allocation8 + $0x38] sm:$0xf]
        %v894 = vld [vmem:[#allocation8 + $0x3c] sm:$0xf]
        %v895 = vld [vmem:[%s5] sm:$0x1]
        %v897 = vlaneseq
        %v898 = vshrl.u32 %v897, 7
        %v899 = vsub.s32 0, %v898
        %v900 = vrot.slane %v895, %v899
        %v918 = vunpack.c.l.b16 %v879
        %v919 = vunpack.c.l.b16 %v880
        %v920 = vunpack.c.l.b16 %v881
        %v921 = vunpack.c.l.b16 %v882
        %v922 = vunpack.c.l.b16 %v883
        %v923 = vunpack.c.l.b16 %v884
        %v924 = vunpack.c.l.b16 %v885
        %v925 = vunpack.c.l.b16 %v886
        %v926 = vunpack.c.l.b16 %v887
        %v927 = vunpack.c.l.b16 %v888
        %v928 = vunpack.c.l.b16 %v889
        %v929 = vunpack.c.l.b16 %v890
        %v930 = vunpack.c.l.b16 %v891
        %v931 = vunpack.c.l.b16 %v892
        %v932 = vunpack.c.l.b16 %v893
        %v933 = vunpack.c.l.b16 %v894
        %v934 = vpack.c.b16 %v919, %v918
        %v935 = vpack.c.b16 %v921, %v920
        %v936 = vpack.c.b16 %v923, %v922
        %v937 = vpack.c.b16 %v925, %v924
        %v938 = vpack.c.b16 %v927, %v926
        %v939 = vpack.c.b16 %v929, %v928
        %v940 = vpack.c.b16 %v931, %v930
        %v941 = vpack.c.b16 %v933, %v932
        %950 = vmatprep.subr.bf16.mxu0 0
        %951 = vmatpush1.bf16.msra.mxu0 %v934
        %952 = vmatprep.subr.bf16.mxu0 0
        %953 = vmatpush1.bf16.msra.mxu0 %v935
        %954 = vmatprep.subr.bf16.mxu0 0
        %955 = vmatpush1.bf16.msra.mxu0 %v936
        %956 = vmatprep.subr.bf16.mxu0 0
        %957 = vmatpush1.bf16.msra.mxu0 %v937
        %958 = vmatprep.subr.bf16.mxu0 0
        %959 = vmatpush1.bf16.msra.mxu0 %v938
        %960 = vmatprep.subr.bf16.mxu0 0
        %961 = vmatpush1.bf16.msra.mxu0 %v939
        %962 = vmatprep.subr.bf16.mxu0 0
        %963 = vmatpush1.bf16.msra.mxu0 %v940
        %964 = vmatprep.subr.bf16.mxu0 0
        %965 = vmatpush1.bf16.msra.mxu0 %v941
        %966 = vmatprep.subr.bf16.mxu0 0
        %967 = vmatpush1.bf16.msra.mxu0 0
        %968 = vmatprep.subr.bf16.mxu0 0
        %969 = vmatpush1.bf16.msra.mxu0 0
        %970 = vmatprep.subr.bf16.mxu0 0
        %971 = vmatpush1.bf16.msra.mxu0 0
        %972 = vmatprep.subr.bf16.mxu0 0
        %973 = vmatpush1.bf16.msra.mxu0 0
        %974 = vmatprep.subr.bf16.mxu0 0
        %975 = vmatpush1.bf16.msra.mxu0 0
        %976 = vmatprep.subr.bf16.mxu0 0
        %977 = vmatpush1.bf16.msra.mxu0 0
        %978 = vmatprep.subr.bf16.mxu0 0
        %979 = vmatpush1.bf16.msra.mxu0 0
        %980 = vmatprep.subr.bf16.mxu0 0
        %981 = vmatpush1.bf16.msra.mxu0 0
        %982 = vmatprep.mubr.bf16.mxu0 0
        %983 = vmatmul.mubr.bf16.gmra.mrb[0].mxu0 %v871
        %v984 = vpop.f32.mrb[0].mxu0
        %v985 = vadd.f32 %v900, %v984
        %v986 = vpop.f32.mrb[0].mxu0
        %v987 = vpop.f32.mrb[0].mxu0
        %v988 = vadd.f32 %v900, %v987
        %v989 = vpop.f32.mrb[0].mxu0
        %990 = vmatprep.mubr.bf16.mxu0 0
        %991 = vmatmul.mubr.bf16.gmra.mrb[0].mxu0 %v872
        %v992 = vpop.f32.mrb[0].mxu0
        %v993 = vadd.f32 %v900, %v992
        %v994 = vpop.f32.mrb[0].mxu0
        %v995 = vpop.f32.mrb[0].mxu0
        %v996 = vadd.f32 %v900, %v995
        %v997 = vpop.f32.mrb[0].mxu0
        %998 = vmatprep.mubr.bf16.mxu0 0
        %999 = vmatmul.mubr.bf16.gmra.mrb[0].mxu0 %v873
        %v1000 = vpop.f32.mrb[0].mxu0
        %v1001 = vadd.f32 %v900, %v1000
        %v1002 = vpop.f32.mrb[0].mxu0
        %v1003 = vpop.f32.mrb[0].mxu0
        %v1004 = vadd.f32 %v900, %v1003
        %v1005 = vpop.f32.mrb[0].mxu0
        %1006 = vmatprep.mubr.bf16.mxu0 0
        %1007 = vmatmul.mubr.bf16.gmra.mrb[0].mxu0 %v874
        %v1008 = vpop.f32.mrb[0].mxu0
        %v1009 = vadd.f32 %v900, %v1008
        %v1010 = vpop.f32.mrb[0].mxu0
        %v1011 = vpop.f32.mrb[0].mxu0
        %v1012 = vadd.f32 %v900, %v1011
        %v1013 = vpop.f32.mrb[0].mxu0
        %1014 = vmatprep.mubr.bf16.mxu0 0
        %1015 = vmatmul.mubr.bf16.gmra.mrb[0].mxu0 %v875
        %v1016 = vpop.f32.mrb[0].mxu0
        %v1017 = vadd.f32 %v900, %v1016
        %v1018 = vpop.f32.mrb[0].mxu0
        %v1019 = vpop.f32.mrb[0].mxu0
        %v1020 = vadd.f32 %v900, %v1019
        %v1021 = vpop.f32.mrb[0].mxu0
        %1022 = vmatprep.mubr.bf16.mxu0 0
        %1023 = vmatmul.mubr.bf16.gmra.mrb[0].mxu0 %v876
        %v1024 = vpop.f32.mrb[0].mxu0
        %v1025 = vadd.f32 %v900, %v1024
        %v1026 = vpop.f32.mrb[0].mxu0
        %v1027 = vpop.f32.mrb[0].mxu0
        %v1028 = vadd.f32 %v900, %v1027
        %v1029 = vpop.f32.mrb[0].mxu0
        %1030 = vmatprep.mubr.bf16.mxu0 0
        %1031 = vmatmul.mubr.bf16.gmra.mrb[0].mxu0 %v877
        %v1032 = vpop.f32.mrb[0].mxu0
        %v1033 = vadd.f32 %v900, %v1032
        %v1034 = vpop.f32.mrb[0].mxu0
        %v1035 = vpop.f32.mrb[0].mxu0
        %v1036 = vadd.f32 %v900, %v1035
        %v1037 = vpop.f32.mrb[0].mxu0
        %1038 = vmatprep.mubr.bf16.mxu0 0
        %1039 = vmatmul.mubr.bf16.gmra.mrb[0].mxu0 %v878
        %v1040 = vpop.f32.mrb[0].mxu0
        %v1041 = vadd.f32 %v900, %v1040
        %v1042 = vpop.f32.mrb[0].mxu0
        %v1043 = vpop.f32.mrb[0].mxu0
        %v1044 = vadd.f32 %v900, %v1043
        %v1045 = vpop.f32.mrb[0].mxu0
        %1046 = vdwg.mxu0
        %vm1047 = vcmp.gt.f32.partialorder %v985, 0.0
        %vm1048 = vcmp.gt.f32.partialorder %v988, 0.0
        %vm1049 = vcmp.gt.f32.partialorder %v993, 0.0
        %vm1050 = vcmp.gt.f32.partialorder %v996, 0.0
        %vm1051 = vcmp.gt.f32.partialorder %v1001, 0.0
        %vm1052 = vcmp.gt.f32.partialorder %v1004, 0.0
        %vm1053 = vcmp.gt.f32.partialorder %v1009, 0.0
        %vm1054 = vcmp.gt.f32.partialorder %v1012, 0.0
        %vm1055 = vcmp.gt.f32.partialorder %v1017, 0.0
        %vm1056 = vcmp.gt.f32.partialorder %v1020, 0.0
        %vm1057 = vcmp.gt.f32.partialorder %v1025, 0.0
        %vm1058 = vcmp.gt.f32.partialorder %v1028, 0.0
        %vm1059 = vcmp.gt.f32.partialorder %v1033, 0.0
        %vm1060 = vcmp.gt.f32.partialorder %v1036, 0.0
        %vm1061 = vcmp.gt.f32.partialorder %v1041, 0.0
        %vm1062 = vcmp.gt.f32.partialorder %v1044, 0.0
        %v1063 = vmin.f32 %v985, 0.0
        %v1064 = vmin.f32 %v988, 0.0
        %v1065 = vmin.f32 %v993, 0.0
        %v1066 = vmin.f32 %v996, 0.0
        %v1067 = vmin.f32 %v1001, 0.0
        %v1068 = vmin.f32 %v1004, 0.0
        %v1069 = vmin.f32 %v1009, 0.0
        %v1070 = vmin.f32 %v1012, 0.0
        %v1071 = vmin.f32 %v1017, 0.0
        %v1072 = vmin.f32 %v1020, 0.0
        %v1073 = vmin.f32 %v1025, 0.0
        %v1074 = vmin.f32 %v1028, 0.0
        %v1075 = vmin.f32 %v1033, 0.0
        %v1076 = vmin.f32 %v1036, 0.0
        %v1077 = vmin.f32 %v1041, 0.0
        %v1078 = vmin.f32 %v1044, 0.0
        %v1079 = vmul.f32 %v1063, 1.442695
        %v1080 = vpow.pop %v1079
        %v1081 = vmul.f32 %v1064, 1.442695
        %v1082 = vpow.pop %v1081
        %v1083 = vmul.f32 %v1065, 1.442695
        %v1084 = vpow.pop %v1083
        %v1085 = vmul.f32 %v1066, 1.442695
        %v1086 = vpow.pop %v1085
        %v1087 = vmul.f32 %v1067, 1.442695
        %v1088 = vpow.pop %v1087
        %v1089 = vmul.f32 %v1068, 1.442695
        %v1090 = vpow.pop %v1089
        %v1091 = vmul.f32 %v1069, 1.442695
        %v1092 = vpow.pop %v1091
        %v1093 = vmul.f32 %v1070, 1.442695
        %v1094 = vpow.pop %v1093
        %v1095 = vmul.f32 %v1071, 1.442695
        %v1096 = vpow.pop %v1095
        %v1097 = vmul.f32 %v1072, 1.442695
        %v1098 = vpow.pop %v1097
        %v1099 = vmul.f32 %v1073, 1.442695
        %v1100 = vpow.pop %v1099
        %v1101 = vmul.f32 %v1074, 1.442695
        %v1102 = vpow.pop %v1101
        %v1103 = vmul.f32 %v1075, 1.442695
        %v1104 = vpow.pop %v1103
        %v1105 = vmul.f32 %v1076, 1.442695
        %v1106 = vpow.pop %v1105
        %v1107 = vmul.f32 %v1077, 1.442695
        %v1108 = vpow.pop %v1107
        %v1109 = vmul.f32 %v1078, 1.442695
        %v1110 = vpow.pop %v1109
        %v1111 = vsub.f32 %v1080, 1.0
        %v1112 = vsub.f32 %v1082, 1.0
        %v1113 = vsub.f32 %v1084, 1.0
        %v1114 = vsub.f32 %v1086, 1.0
        %v1115 = vsub.f32 %v1088, 1.0
        %v1116 = vsub.f32 %v1090, 1.0
        %v1117 = vsub.f32 %v1092, 1.0
        %v1118 = vsub.f32 %v1094, 1.0
        %v1119 = vsub.f32 %v1096, 1.0
        %v1120 = vsub.f32 %v1098, 1.0
        %v1121 = vsub.f32 %v1100, 1.0
        %v1122 = vsub.f32 %v1102, 1.0
        %v1123 = vsub.f32 %v1104, 1.0
        %v1124 = vsub.f32 %v1106, 1.0
        %v1125 = vsub.f32 %v1108, 1.0
        %v1126 = vsub.f32 %v1110, 1.0
        %v1127 = vsel %vm1047, %v985, %v1111
        %v1128 = vsel %vm1048, %v988, %v1112
        %v1129 = vsel %vm1049, %v993, %v1113
        %v1130 = vsel %vm1050, %v996, %v1114
        %v1131 = vsel %vm1051, %v1001, %v1115
        %v1132 = vsel %vm1052, %v1004, %v1116
        %v1133 = vsel %vm1053, %v1009, %v1117
        %v1134 = vsel %vm1054, %v1012, %v1118
        %v1135 = vsel %vm1055, %v1017, %v1119
        %v1136 = vsel %vm1056, %v1020, %v1120
        %v1137 = vsel %vm1057, %v1025, %v1121
        %v1138 = vsel %vm1058, %v1028, %v1122
        %v1139 = vsel %vm1059, %v1033, %v1123
        %v1140 = vsel %vm1060, %v1036, %v1124
        %v1141 = vsel %vm1061, %v1041, %v1125
        %v1142 = vsel %vm1062, %v1044, %v1126
        %v1143 = vpack.c.bf16 %v1128, %v1127
        %v1144 = vpack.c.bf16 %v1130, %v1129
        %v1145 = vpack.c.bf16 %v1132, %v1131
        %v1146 = vpack.c.bf16 %v1134, %v1133
        %v1147 = vpack.c.bf16 %v1136, %v1135
        %v1148 = vpack.c.bf16 %v1138, %v1137
        %v1149 = vpack.c.bf16 %v1140, %v1139
        %v1150 = vpack.c.bf16 %v1142, %v1141
        %v1151 = vld [vmem:[#allocation10] sm:$0xf]
        %v1152 = vld [vmem:[#allocation10 + $0x4] sm:$0xf]
        %v1153 = vld [vmem:[#allocation10 + $0x8] sm:$0xf]
        %v1154 = vld [vmem:[#allocation10 + $0xc] sm:$0xf]
        %v1155 = vld [vmem:[#allocation10 + $0x10] sm:$0xf]
        %v1156 = vld [vmem:[#allocation10 + $0x14] sm:$0xf]
        %v1157 = vld [vmem:[#allocation10 + $0x18] sm:$0xf]
        %v1158 = vld [vmem:[#allocation10 + $0x1c] sm:$0xf]
        %v1159 = vld [vmem:[#allocation10 + $0x20] sm:$0xf]
        %v1160 = vld [vmem:[#allocation10 + $0x24] sm:$0xf]
        %v1161 = vld [vmem:[#allocation10 + $0x28] sm:$0xf]
        %v1162 = vld [vmem:[#allocation10 + $0x2c] sm:$0xf]
        %v1163 = vld [vmem:[#allocation10 + $0x30] sm:$0xf]
        %v1164 = vld [vmem:[#allocation10 + $0x34] sm:$0xf]
        %v1165 = vld [vmem:[#allocation10 + $0x38] sm:$0xf]
        %v1166 = vld [vmem:[#allocation10 + $0x3c] sm:$0xf]
        %v1167 = vld [vmem:[%s7] sm:$0x1]
        %v1169 = vlaneseq
        %v1170 = vshrl.u32 %v1169, 7
        %v1171 = vsub.s32 0, %v1170
        %v1172 = vrot.slane %v1167, %v1171
        %v1190 = vunpack.c.l.b16 %v1151
        %v1191 = vunpack.c.l.b16 %v1152
        %v1192 = vunpack.c.l.b16 %v1153
        %v1193 = vunpack.c.l.b16 %v1154
        %v1194 = vunpack.c.l.b16 %v1155
        %v1195 = vunpack.c.l.b16 %v1156
        %v1196 = vunpack.c.l.b16 %v1157
        %v1197 = vunpack.c.l.b16 %v1158
        %v1198 = vunpack.c.l.b16 %v1159
        %v1199 = vunpack.c.l.b16 %v1160
        %v1200 = vunpack.c.l.b16 %v1161
        %v1201 = vunpack.c.l.b16 %v1162
        %v1202 = vunpack.c.l.b16 %v1163
        %v1203 = vunpack.c.l.b16 %v1164
        %v1204 = vunpack.c.l.b16 %v1165
        %v1205 = vunpack.c.l.b16 %v1166
        %v1206 = vpack.c.b16 %v1191, %v1190
        %v1207 = vpack.c.b16 %v1193, %v1192
        %v1208 = vpack.c.b16 %v1195, %v1194
        %v1209 = vpack.c.b16 %v1197, %v1196
        %v1210 = vpack.c.b16 %v1199, %v1198
        %v1211 = vpack.c.b16 %v1201, %v1200
        %v1212 = vpack.c.b16 %v1203, %v1202
        %v1213 = vpack.c.b16 %v1205, %v1204
        %1222 = vmatprep.subr.bf16.mxu0 0
        %1223 = vmatpush1.bf16.msra.mxu0 %v1206
        %1224 = vmatprep.subr.bf16.mxu0 0
        %1225 = vmatpush1.bf16.msra.mxu0 %v1207
        %1226 = vmatprep.subr.bf16.mxu0 0
        %1227 = vmatpush1.bf16.msra.mxu0 %v1208
        %1228 = vmatprep.subr.bf16.mxu0 0
        %1229 = vmatpush1.bf16.msra.mxu0 %v1209
        %1230 = vmatprep.subr.bf16.mxu0 0
        %1231 = vmatpush1.bf16.msra.mxu0 %v1210
        %1232 = vmatprep.subr.bf16.mxu0 0
        %1233 = vmatpush1.bf16.msra.mxu0 %v1211
        %1234 = vmatprep.subr.bf16.mxu0 0
        %1235 = vmatpush1.bf16.msra.mxu0 %v1212
        %1236 = vmatprep.subr.bf16.mxu0 0
        %1237 = vmatpush1.bf16.msra.mxu0 %v1213
        %1238 = vmatprep.subr.bf16.mxu0 0
        %1239 = vmatpush1.bf16.msra.mxu0 0
        %1240 = vmatprep.subr.bf16.mxu0 0
        %1241 = vmatpush1.bf16.msra.mxu0 0
        %1242 = vmatprep.subr.bf16.mxu0 0
        %1243 = vmatpush1.bf16.msra.mxu0 0
        %1244 = vmatprep.subr.bf16.mxu0 0
        %1245 = vmatpush1.bf16.msra.mxu0 0
        %1246 = vmatprep.subr.bf16.mxu0 0
        %1247 = vmatpush1.bf16.msra.mxu0 0
        %1248 = vmatprep.subr.bf16.mxu0 0
        %1249 = vmatpush1.bf16.msra.mxu0 0
        %1250 = vmatprep.subr.bf16.mxu0 0
        %1251 = vmatpush1.bf16.msra.mxu0 0
        %1252 = vmatprep.subr.bf16.mxu0 0
        %1253 = vmatpush1.bf16.msra.mxu0 0
        %1254 = vmatprep.mubr.bf16.mxu0 0
        %1255 = vmatmul.mubr.bf16.gmra.mrb[0].mxu0 %v1143
        %v1256 = vpop.f32.mrb[0].mxu0
        %v1257 = vadd.f32 %v1172, %v1256
        %v1258 = vpop.f32.mrb[0].mxu0
        %v1259 = vpop.f32.mrb[0].mxu0
        %v1260 = vadd.f32 %v1172, %v1259
        %v1261 = vpop.f32.mrb[0].mxu0
        %1262 = vmatprep.mubr.bf16.mxu0 0
        %1263 = vmatmul.mubr.bf16.gmra.mrb[0].mxu0 %v1144
        %v1264 = vpop.f32.mrb[0].mxu0
        %v1265 = vadd.f32 %v1172, %v1264
        %v1266 = vpop.f32.mrb[0].mxu0
        %v1267 = vpop.f32.mrb[0].mxu0
        %v1268 = vadd.f32 %v1172, %v1267
        %v1269 = vpop.f32.mrb[0].mxu0
        %1270 = vmatprep.mubr.bf16.mxu0 0
        %1271 = vmatmul.mubr.bf16.gmra.mrb[0].mxu0 %v1145
        %v1272 = vpop.f32.mrb[0].mxu0
        %v1273 = vadd.f32 %v1172, %v1272
        %v1274 = vpop.f32.mrb[0].mxu0
        %v1275 = vpop.f32.mrb[0].mxu0
        %v1276 = vadd.f32 %v1172, %v1275
        %v1277 = vpop.f32.mrb[0].mxu0
        %1278 = vmatprep.mubr.bf16.mxu0 0
        %1279 = vmatmul.mubr.bf16.gmra.mrb[0].mxu0 %v1146
        %v1280 = vpop.f32.mrb[0].mxu0
        %v1281 = vadd.f32 %v1172, %v1280
        %v1282 = vpop.f32.mrb[0].mxu0
        %v1283 = vpop.f32.mrb[0].mxu0
        %v1284 = vadd.f32 %v1172, %v1283
        %v1285 = vpop.f32.mrb[0].mxu0
        %1286 = vmatprep.mubr.bf16.mxu0 0
        %1287 = vmatmul.mubr.bf16.gmra.mrb[0].mxu0 %v1147
        %v1288 = vpop.f32.mrb[0].mxu0
        %v1289 = vadd.f32 %v1172, %v1288
        %v1290 = vpop.f32.mrb[0].mxu0
        %v1291 = vpop.f32.mrb[0].mxu0
        %v1292 = vadd.f32 %v1172, %v1291
        %v1293 = vpop.f32.mrb[0].mxu0
        %1294 = vmatprep.mubr.bf16.mxu0 0
        %1295 = vmatmul.mubr.bf16.gmra.mrb[0].mxu0 %v1148
        %v1296 = vpop.f32.mrb[0].mxu0
        %v1297 = vadd.f32 %v1172, %v1296
        %v1298 = vpop.f32.mrb[0].mxu0
        %v1299 = vpop.f32.mrb[0].mxu0
        %v1300 = vadd.f32 %v1172, %v1299
        %v1301 = vpop.f32.mrb[0].mxu0
        %1302 = vmatprep.mubr.bf16.mxu0 0
        %1303 = vmatmul.mubr.bf16.gmra.mrb[0].mxu0 %v1149
        %v1304 = vpop.f32.mrb[0].mxu0
        %v1305 = vadd.f32 %v1172, %v1304
        %v1306 = vpop.f32.mrb[0].mxu0
        %v1307 = vpop.f32.mrb[0].mxu0
        %v1308 = vadd.f32 %v1172, %v1307
        %v1309 = vpop.f32.mrb[0].mxu0
        %1310 = vmatprep.mubr.bf16.mxu0 0
        %1311 = vmatmul.mubr.bf16.gmra.mrb[0].mxu0 %v1150
        %v1312 = vpop.f32.mrb[0].mxu0
        %v1313 = vadd.f32 %v1172, %v1312
        %v1314 = vpop.f32.mrb[0].mxu0
        %v1315 = vpop.f32.mrb[0].mxu0
        %v1316 = vadd.f32 %v1172, %v1315
        %v1317 = vpop.f32.mrb[0].mxu0
        %1318 = vdwg.mxu0
        %1319 = vst [vmem:[%s417] sm:$0xff] %v1257
        %1320 = vst [vmem:[%s417 + $0x8] sm:$0xff] %v1260
        %1321 = vst [vmem:[%s417 + $0x10] sm:$0xff] %v1265
        %1322 = vst [vmem:[%s417 + $0x18] sm:$0xff] %v1268
        %1323 = vst [vmem:[%s417 + $0x20] sm:$0xff] %v1273
        %1324 = vst [vmem:[%s417 + $0x28] sm:$0xff] %v1276
        %1325 = vst [vmem:[%s417 + $0x30] sm:$0xff] %v1281
        %1326 = vst [vmem:[%s417 + $0x38] sm:$0xff] %v1284
        %1327 = vst [vmem:[%s417 + $0x40] sm:$0xff] %v1289
        %1328 = vst [vmem:[%s417 + $0x48] sm:$0xff] %v1292
        %1329 = vst [vmem:[%s417 + $0x50] sm:$0xff] %v1297
        %1330 = vst [vmem:[%s417 + $0x58] sm:$0xff] %v1300
        %1331 = vst [vmem:[%s417 + $0x60] sm:$0xff] %v1305
        %1332 = vst [vmem:[%s417 + $0x68] sm:$0xff] %v1308
        %1333 = vst [vmem:[%s417 + $0x70] sm:$0xff] %v1313
        %1334 = vst [vmem:[%s417 + $0x78] sm:$0xff] %v1316
        %s1335 = sand.u32 %s220, 1
        %s1336 = scalar_lea.sflag [#allocation4], %s1335
        %s1337 = sand.u32 %s220, 1
        %s1338 = smul.addr %s1337, 128
        %s1339 = scalar_lea.vmem [#allocation11], %s1338
        // Predicated region
        $region73: #{tpu_custom_call.1} parent=51 // pred_check
          %p1340 = pneg %p230
        $region74: #{tpu_custom_call.1} parent=51 // pred_check_branch
          %1342 = sbr.rel (%p1340) target = $region76
        $region75: #{tpu_custom_call.1} parent=51 // pred_region
          %s1344 = ssub.s32 2048, 2048
          %1345 = vsyncadd %s1336, %s1344
          %s1346 = smul.addr %s29, 16
          %s1347 = smul.addr %s1346, 128
          %s1348 = scalar_lea.hbm %s8, %s1347
          %s1349 = sshll.u32 %s1339, 4
          %s1350 = int_to_ptr.vmem [resolvable:$true] %s1349
          %1355 = dma.vmem_to_hbm [thread:$0]  %s1350, 2048, %s1348, %s1336, 128, 128, 8
        $region76: #{tpu_custom_call.1} parent=51 // pred_fallthru
          _
      $region52: #{tpu_custom_call.1} parent=5 // pred_fallthru
        _
      %p1356 = scmp.le.s32.totalorder 2, %s24
      // Predicated region
      $region77: #{tpu_custom_call.1} parent=5 // pred_check
        %p1357 = pneg %p1356
      $region78: #{tpu_custom_call.1} parent=5 // pred_check_branch
        %1359 = sbr.rel (%p1357) target = $region80
      $region79: #{tpu_custom_call.1} parent=5 // pred_region
        %s1360 = ssub.s32 %s24, 2
        // Predicated region
        $region81: #{tpu_custom_call.1} parent=79 // pred_check
          %p1361 = pneg %p236
        $region82: #{tpu_custom_call.1} parent=79 // pred_check_branch
          %1363 = sbr.rel (%p1361) target = $region84
        $region83: #{tpu_custom_call.1} parent=79 // pred_region
          %s1364 = sand.u32 %s221, 1
          %s1365 = scalar_lea.sflag [#allocation4], %s1364
          %s1366 = sand.u32 %s221, 1
          %s1367 = smul.addr %s1366, 128
          %s1368 = scalar_lea.vmem [#allocation11], %s1367
          %1369 = dma.done %s1365, 2048
        $region84: #{tpu_custom_call.1} parent=79 // pred_fallthru
          _
      $region80: #{tpu_custom_call.1} parent=5 // pred_fallthru
        _
    $region6: #{tpu_custom_call.1} parent=1 // loop_footer
      %s28 = sadd.s32 1, %s24
    $region7: #{tpu_custom_call.1} parent=1 // loop_footer_branch
      %23 = sbr.rel target = $region3
    $region8: #{tpu_custom_call.1} parent=1 // loop_exit
      _
    %1370 = vsyncpa [#allocation3], 1
    %s1371 = scalar_lea.sflag [#allocation3], 1
    %1372 = vsyncpa %s1371, 1
    %1373 = vsyncpa [#allocation6], 1
    %s1374 = scalar_lea.sflag [#allocation6], 1
    %1375 = vsyncpa %s1374, 1
    %1376 = vsyncpa [#allocation9], 1
    %1377 = vsyncpa [#allocation4], 1
    %s1378 = scalar_lea.sflag [#allocation4], 1
    %1379 = vsyncpa %s1378, 1

</llo_original>
